<compile_context>
chip_gen: v7x
topology: tpu7x:2x2x1
jax: 0.10.0
libtpu: 0.0.40
codegen_flags: <defaults>
</compile_context>

<pallas_src>
import jax
import jax.numpy as jnp
from jax.experimental import pallas as pl
from jax.experimental.pallas import tpu as pltpu

LANE = 128
_VMEM_PLAN_BYTES = 40 * 1024 * 1024   # conservative: v7x has only 64 MiB physical VMEM
_VMEM_LIMIT_BYTES = 48 * 1024 * 1024  # raise Mosaic's scoped limit, still < v7x physical
_TILE_O_CAP = 65536                   # output-tile lanes; enough to amortize per-step cost


def _pad8(n):
    return ((n + 7) // 8) * 8


def _pick_tile(D, max_elems):
    """Largest t with D % t == 0, (t % 128 == 0 or t == D), t <= max_elems."""
    max_elems = max(int(max_elems), LANE)
    if D <= max_elems:
        return D
    t = (max_elems // LANE) * LANE
    while t >= LANE:
        if D % t == 0:
            return t
        t -= LANE
    return D  # no nice divisor; a full-extent block is always legal


def _plan_layer(B, J, D):
    """Choose ('fused'|'two_pass', tile_o) under a v7x-safe VMEM budget."""
    Bp, Kp = _pad8(B), _pad8(J)
    dt = 4  # f32
    slab_bytes = dt * Bp * J * D                    # resident feature slab (sublane-padded)
    # per-output-lane cost of double-buffered feat/weight/out blocks + one mul temporary
    per_o_fused = dt * (2 * Bp * J + 2 * Kp * J + 2 * Bp + Bp * J)
    margin = 2 * 1024 * 1024
    avail = _VMEM_PLAN_BYTES - slab_bytes - margin
    if avail >= per_o_fused * min(D, LANE):
        tile_o = _pick_tile(D, min(_TILE_O_CAP, avail // per_o_fused))
        return "fused", tile_o
    # fallback: stream features twice, no slab
    per_o_two = dt * max(2 * Bp * J + 2 * Kp * J + Bp * J,   # logits pass
                         2 * Bp + 2 * Bp + Bp)               # fuse pass
    avail2 = _VMEM_PLAN_BYTES - margin
    tile_o = _pick_tile(D, min(_TILE_O_CAP, avail2 // per_o_two))
    return "two_pass", tile_o


# ---------------------------------------------------------------------------
# Shared kernel pieces
# ---------------------------------------------------------------------------
def _partial_logits(f, w, acc_ref):
    """acc[b,k] += sum_lanes f[b,:] * w[k,:]  (VPU multiply + XLU lane reduce)."""
    B = f.shape[0]
    K = w.shape[0]
    col = jax.lax.broadcasted_iota(jnp.int32, (B, K), dimension=1)
    partial = jnp.zeros((B, K), jnp.float32)
    for ko in range(K):
        s = jnp.sum(f * w[ko:ko + 1, :], axis=-1, keepdims=True)   # (B, 1)
        partial = partial + jnp.where(col == ko, s, 0.0)
    acc_ref[...] += partial


def _softmax_with_bias(acc, bias_ref, K):
    """softmax(acc + bias) over the last axis; bias is an SMEM ref of shape (K,)."""
    col = jax.lax.broadcasted_iota(jnp.int32, acc.shape, dimension=1)
    logits = acc
    for ko in range(K):
        logits = logits + jnp.where(col == ko, bias_ref[ko], 0.0)
    m = jnp.max(logits, axis=-1, keepdims=True)
    e = jnp.exp(logits - m)
    return e / jnp.sum(e, axis=-1, keepdims=True)


# ---------------------------------------------------------------------------
# Path A: fused single kernel (features read from HBM exactly once)
#   grid = (phase, k): phase 0 streams feature/weight tiles, accumulates logits and
#   fills a VMEM-resident feature slab; phase 1 computes softmax-weighted fusion from
#   the slab and writes lane-dense output tiles.
# ---------------------------------------------------------------------------
def _make_fused_kernel(B, J, D, tile_o):
    tile_f = J * tile_o
    T = D // tile_o

    def kernel(bias_ref, f_ref, w_ref, o_ref, acc_ref, attn_ref, slab_ref):
        p = pl.program_id(0)
        k = pl.program_id(1)

        @pl.when(p == 0)
        def _logits_phase():
            @pl.when(k == 0)
            def _():
                acc_ref[...] = jnp.zeros_like(acc_ref)

            f = f_ref[...]                              # (B, tile_f) f32
            _partial_logits(f, w_ref[...], acc_ref)
            # stash the feature tile so phase 1 never touches HBM again
            off = pl.multiple_of(k * tile_f, tile_f)
            slab_ref[:, pl.ds(off, tile_f)] = f

            @pl.when(k == T - 1)
            def _():
                attn_ref[...] = _softmax_with_bias(acc_ref[...], bias_ref, J)

        @pl.when(p == 1)
        def _fuse_phase():
            a = attn_ref[...]                           # (B, J)

            def seg(j):
                off = pl.multiple_of(j * D + k * tile_o, tile_o)
                return slab_ref[:, pl.ds(off, tile_o)]

            acc = a[:, 0:1] * seg(0)
            for j in range(1, J):
                acc = acc + a[:, j:j + 1] * seg(j)
            o_ref[...] = acc

    return kernel


def _attention_fusion_fused(feat_flat, w_flat, bias, D, tile_o):
    """feat_flat: [B, J*D]; w_flat: [K, J*D]; bias: [K]. Returns fused [B, D]."""
    B, F = feat_flat.shape
    K = w_flat.shape[0]
    J = F // D
    tile_f = J * tile_o
    T = D // tile_o

    def io_map(p, k):
        # phase 0: stream tile k; phase 1: freeze on the last tile -> no re-fetch.
        return (0, k * (1 - p) + (T - 1) * p)

    return pl.pallas_call(
        _make_fused_kernel(B, J, D, tile_o),
        out_shape=jax.ShapeDtypeStruct((B, D), jnp.float32),
        grid_spec=pltpu.PrefetchScalarGridSpec(
            num_scalar_prefetch=0,
            grid=(2, T),
            in_specs=[
                pl.BlockSpec(memory_space=pltpu.MemorySpace.SMEM),   # bias (K,)
                pl.BlockSpec((B, tile_f), io_map),                   # features [B, J*D]
                pl.BlockSpec((K, tile_f), io_map),                   # weights  [K, J*D]
            ],
            out_specs=pl.BlockSpec((B, tile_o), lambda p, k: (0, k * p)),
            scratch_shapes=[
                pltpu.VMEM((B, K), jnp.float32),     # logits accumulator
                pltpu.VMEM((B, K), jnp.float32),     # attention weights
                pltpu.VMEM((B, F), jnp.float32),     # resident feature slab
            ],
        ),
        compiler_params=pltpu.CompilerParams(
            dimension_semantics=("arbitrary", "arbitrary"),
            vmem_limit_bytes=_VMEM_LIMIT_BYTES,
        ),
    )(bias, feat_flat, w_flat)


# ---------------------------------------------------------------------------
# Path B (fallback when the slab does not fit VMEM): two streaming kernels with
# large lane-dense tiles.  Features are read twice from HBM.
# ---------------------------------------------------------------------------
def _make_logits_kernel(J):
    def kernel(bias_ref, f_ref, w_ref, attn_ref, acc_ref):
        k = pl.program_id(0)

        @pl.when(k == 0)
        def _():
            acc_ref[...] = jnp.zeros_like(acc_ref)

        _partial_logits(f_ref[...], w_ref[...], acc_ref)

        @pl.when(k == pl.num_programs(0) - 1)
        def _():
            attn_ref[...] = _softmax_with_bias(acc_ref[...], bias_ref, J)

    return kernel


def _fuse_kernel(attn_ref, f_ref, o_ref):
    j = pl.program_id(1)

    @pl.when(j == 0)
    def _():
        o_ref[...] = jnp.zeros_like(o_ref)

    attn = attn_ref[...]                                   # (B, K)
    col = jax.lax.broadcasted_iota(jnp.int32, attn.shape, dimension=1)
    a_j = jnp.sum(jnp.where(col == j, attn, 0.0), axis=1, keepdims=True)   # (B, 1)
    o_ref[...] += a_j * f_ref[...]


def _attention_fusion_two_pass(feat_flat, w_flat, bias, D, tile_o):
    B, F = feat_flat.shape
    K = w_flat.shape[0]
    J = F // D
    tile_f = J * tile_o
    T = D // tile_o          # == F // tile_f

    attn = pl.pallas_call(
        _make_logits_kernel(J),
        out_shape=jax.ShapeDtypeStruct((B, K), jnp.float32),
        grid_spec=pltpu.PrefetchScalarGridSpec(
            num_scalar_prefetch=0,
            grid=(T,),
            in_specs=[
                pl.BlockSpec(memory_space=pltpu.MemorySpace.SMEM),   # bias (K,)
                pl.BlockSpec((B, tile_f), lambda k: (0, k)),
                pl.BlockSpec((K, tile_f), lambda k: (0, k)),
            ],
            out_specs=pl.BlockSpec((B, K), lambda k: (0, 0)),
            scratch_shapes=[pltpu.VMEM((B, K), jnp.float32)],
        ),
        compiler_params=pltpu.CompilerParams(
            dimension_semantics=("arbitrary",),
            vmem_limit_bytes=_VMEM_LIMIT_BYTES,
        ),
    )(bias, feat_flat, w_flat)

    fused = pl.pallas_call(
        _fuse_kernel,
        out_shape=jax.ShapeDtypeStruct((B, D), jnp.float32),
        grid_spec=pltpu.PrefetchScalarGridSpec(
            num_scalar_prefetch=0,
            grid=(T, J),                                    # j inner -> output accumulates
            in_specs=[
                pl.BlockSpec((B, K), lambda d, j: (0, 0)),              # attn (resident)
                pl.BlockSpec((B, tile_o), lambda d, j: (0, j * T + d)), # flat feature tile
            ],
            out_specs=pl.BlockSpec((B, tile_o), lambda d, j: (0, d)),
        ),
        compiler_params=pltpu.CompilerParams(
            dimension_semantics=("parallel", "arbitrary"),
            vmem_limit_bytes=_VMEM_LIMIT_BYTES,
        ),
    )(attn, feat_flat)
    return fused


# ---------------------------------------------------------------------------
# Full module forward (layout glue in plain JAX, hot path in Pallas)
# ---------------------------------------------------------------------------
def attention_fusion_forward(feature_sets, params, embed_dims, feature_dims,
                             force_two_pass=False):
    """feature_sets[j][i]: [B, C_i, H_i, W_i]; params[i] = (weight [J, J*D_i], bias [J])."""
    num_images = len(feature_sets)
    num_layers = len(embed_dims)
    batch = feature_sets[0][0].shape[0]
    outputs = []
    for i in range(num_layers):
        D = embed_dims[i] * feature_dims[i] * feature_dims[i]
        # torch.stack([f.view(B,-1)], dim=1).view(B,-1)  ->  flat index j*D + d
        feat_flat = jnp.concatenate(
            [feature_sets[j][i].reshape(batch, D) for j in range(num_images)],
            axis=1).astype(jnp.float32)                         # [B, J*D]
        weight, bias = params[i]
        w_flat = weight.reshape(num_images, num_images * D).astype(jnp.float32)
        b_vec = bias.reshape(num_images).astype(jnp.float32)

        mode, tile_o = _plan_layer(batch, num_images, D)
        if force_two_pass:
            mode = "two_pass"
        if mode == "fused":
            fused = _attention_fusion_fused(feat_flat, w_flat, b_vec, D, tile_o)
        else:
            fused = _attention_fusion_two_pass(feat_flat, w_flat, b_vec, D, tile_o)

        outputs.append(
            fused.reshape(batch, embed_dims[i], feature_dims[i], feature_dims[i]))
    return outputs


# Pure-JAX reference for verification
def _reference_forward(feature_sets, params, embed_dims, feature_dims):
    num_images = len(feature_sets)
    batch = feature_sets[0][0].shape[0]
    outs = []
    for i in range(len(embed_dims)):
        feats = jnp.stack(
            [feature_sets[j][i].reshape(batch, -1) for j in range(num_images)],
            axis=1)
        flat = feats.reshape(batch, -1)
        weight, bias = params[i]
        logits = flat @ weight.T + bias
        attn = jax.nn.softmax(logits, axis=1)
        fused = jnp.sum(feats * attn[:, :, None], axis=1)
        outs.append(
            fused.reshape(batch, embed_dims[i], feature_dims[i], feature_dims[i]))
    return outs


if __name__ == "__main__":
    # Small shapes consistent with the module structure (real module uses
    # embed_dims=[256,512,1024], feature_dims=[64,32,16]; scaled down here).
    num_images = 2
    batch = 2
    embed_dims = [16, 32, 64]
    feature_dims = [8, 4, 2]

    key = jax.random.PRNGKey(0)

    # deterministic parameters: Linear(C*H*W*num_images -> num_images) per layer
    params = []
    for i in range(len(embed_dims)):
        D = embed_dims[i] * feature_dims[i] * feature_dims[i]
        key, kw, kb = jax.random.split(key, 3)
        w = jax.random.normal(kw, (num_images, num_images * D), jnp.float32) * 0.01
        b = jax.random.normal(kb, (num_images,), jnp.float32) * 0.01
        params.append((w, b))

    # deterministic inputs: feature_sets[j][i] = [B, C_i, H_i, W_i]
    feature_sets = []
    for j in range(num_images):
        per_image = []
        for i in range(len(embed_dims)):
            key, kf = jax.random.split(key)
            per_image.append(jax.random.normal(
                kf, (batch, embed_dims[i], feature_dims[i], feature_dims[i]),
                jnp.float32))
        feature_sets.append(per_image)

    refs = _reference_forward(feature_sets, params, embed_dims, feature_dims)

    # Path A: fused single-read kernel (selected automatically at these sizes)
    outs = attention_fusion_forward(feature_sets, params, embed_dims, feature_dims)
    outs = [jax.block_until_ready(o) for o in outs]
    for o, r in zip(outs, refs):
        assert o.shape == r.shape and o.dtype == jnp.float32
        assert jnp.allclose(o, r, atol=1e-4, rtol=1e-4), "fused path mismatch vs reference"

    # Path B: two-pass streaming fallback (used when the feature slab exceeds VMEM)
    outs2 = attention_fusion_forward(feature_sets, params, embed_dims, feature_dims,
                                     force_two_pass=True)
    outs2 = [jax.block_until_ready(o) for o in outs2]
    for o, r in zip(outs2, refs):
        assert jnp.allclose(o, r, atol=1e-4, rtol=1e-4), "two-pass path mismatch vs reference"

    print("KERNEL_OK")
</pallas_src>

<mosaic_0001>
module attributes {stable_mosaic.version = 11 : i64} {
  func.func @kernel(%arg0: i32, %arg1: i32, %arg2: memref<2xf32, #tpu.memory_space<smem>>, %arg3: memref<2x2048xf32, #tpu.memory_space<vmem>>, %arg4: memref<2x2048xf32, #tpu.memory_space<vmem>>, %arg5: memref<2x1024xf32, #tpu.memory_space<vmem>>, %arg6: memref<2x2xf32, #tpu.memory_space<vmem>>, %arg7: memref<2x2xf32, #tpu.memory_space<vmem>>, %arg8: memref<2x2048xf32, #tpu.memory_space<vmem>>) attributes {dimension_semantics = [#tpu.dimension_semantics<arbitrary>, #tpu.dimension_semantics<arbitrary>], iteration_bounds = array<i64: 2, 1>, scalar_prefetch = 0 : i64, scratch_operands = 3 : i64, tpu.core_type = #tpu.core_type<tc>, window_params = [{transform_indices = @transform_0, window_bounds = array<i64: 2>}, {transform_indices = @transform_1, window_bounds = array<i64: 2, 2048>}, {transform_indices = @transform_2, window_bounds = array<i64: 2, 2048>}, {transform_indices = @transform_3, window_bounds = array<i64: 2, 1024>}]} {
    %c0_i32 = arith.constant 0 : i32
    %0 = arith.cmpi eq, %arg0, %c0_i32 : i32
    %1 = arith.extui %0 : i1 to i32
    %c0_i32_0 = arith.constant 0 : i32
    %2 = arith.cmpi ne, %1, %c0_i32_0 : i32
    scf.if %2 {
      %c0_i32_2 = arith.constant 0 : i32
      %6 = arith.cmpi eq, %arg1, %c0_i32_2 : i32
      %7 = arith.extui %6 : i1 to i32
      %c0_i32_3 = arith.constant 0 : i32
      %8 = arith.cmpi ne, %7, %c0_i32_3 : i32
      scf.if %8 {
        %cst_20 = arith.constant 0.000000e+00 : f32
        %47 = vector.broadcast %cst_20 : f32 to vector<2x2xf32>
        %c0_21 = arith.constant 0 : index
        %c0_22 = arith.constant 0 : index
        %48 = vector.load %arg6[%c0_21, %c0_22] : memref<2x2xf32, #tpu.memory_space<vmem>>, vector<2x2xf32>
        tpu.vector_store %arg6[%c0_21, %c0_22], %47 {strides = array<i32>} : memref<2x2xf32, #tpu.memory_space<vmem>>, vector<2x2xf32>,
      } else {
      }
      %c0 = arith.constant 0 : index
      %c0_4 = arith.constant 0 : index
      %9 = vector.load %arg3[%c0, %c0_4] : memref<2x2048xf32, #tpu.memory_space<vmem>>, vector<2x2048xf32>
      %c0_5 = arith.constant 0 : index
      %c0_6 = arith.constant 0 : index
      %10 = vector.load %arg4[%c0_5, %c0_6] : memref<2x2048xf32, #tpu.memory_space<vmem>>, vector<2x2048xf32>
      %11 = tpu.iota {dimensions = array<i32: 1>} : vector<2x2xi32>
      %cst = arith.constant 0.000000e+00 : f32
      %12 = vector.broadcast %cst : f32 to vector<2x2xf32>
      %13 = vector.extract_strided_slice %10 {offsets = [0, 0], sizes = [1, 2048], strides = [1, 1]} : vector<2x2048xf32> to vector<1x2048xf32>
      %14 = vector.broadcast %13 : vector<1x2048xf32> to vector<2x2048xf32>
      %15 = arith.mulf %9, %14 : vector<2x2048xf32>
      %cst_7 = arith.constant dense<0.000000e+00> : vector<2xf32>
      %16 = vector.multi_reduction <add>, %15, %cst_7 [1] : vector<2x2048xf32> to vector<2xf32>
      %17 = vector.shape_cast %16 : vector<2xf32> to vector<2x1xf32>
      %c0_i32_8 = arith.constant 0 : i32
      %18 = vector.broadcast %c0_i32_8 : i32 to vector<2x2xi32>
      %19 = arith.cmpi eq, %11, %18 : vector<2x2xi32>
      %cst_9 = arith.constant 0.000000e+00 : f32
      %20 = vector.shape_cast %17 : vector<2x1xf32> to vector<2x1xf32>
      %21 = vector.broadcast %20 : vector<2x1xf32> to vector<2x2xf32>
      %22 = vector.broadcast %cst_9 : f32 to vector<2x2xf32>
      %23 = arith.select %19, %21, %22 : vector<2x2xi1>, vector<2x2xf32>
      %24 = arith.addf %12, %23 : vector<2x2xf32>
      %25 = vector.extract_strided_slice %10 {offsets = [1, 0], sizes = [1, 2048], strides = [1, 1]} : vector<2x2048xf32> to vector<1x2048xf32>
      %26 = vector.broadcast %25 : vector<1x2048xf32> to vector<2x2048xf32>
      %27 = arith.mulf %9, %26 : vector<2x2048xf32>
      %cst_10 = arith.constant dense<0.000000e+00> : vector<2xf32>
      %28 = vector.multi_reduction <add>, %27, %cst_10 [1] : vector<2x2048xf32> to vector<2xf32>
      %29 = vector.shape_cast %28 : vector<2xf32> to vector<2x1xf32>
      %c1_i32_11 = arith.constant 1 : i32
      %30 = vector.broadcast %c1_i32_11 : i32 to vector<2x2xi32>
      %31 = arith.cmpi eq, %11, %30 : vector<2x2xi32>
      %cst_12 = arith.constant 0.000000e+00 : f32
      %32 = vector.shape_cast %29 : vector<2x1xf32> to vector<2x1xf32>
      %33 = vector.broadcast %32 : vector<2x1xf32> to vector<2x2xf32>
      %34 = vector.broadcast %cst_12 : f32 to vector<2x2xf32>
      %35 = arith.select %31, %33, %34 : vector<2x2xi1>, vector<2x2xf32>
      %36 = arith.addf %24, %35 : vector<2x2xf32>
      %c0_13 = arith.constant 0 : index
      %c0_14 = arith.constant 0 : index
      %37 = vector.load %arg6[%c0_13, %c0_14] : memref<2x2xf32, #tpu.memory_space<vmem>>, vector<2x2xf32>
      %38 = arith.addf %37, %36 : vector<2x2xf32>
      %c0_15 = arith.constant 0 : index
      %c0_16 = arith.constant 0 : index
      %39 = vector.load %arg6[%c0_15, %c0_16] : memref<2x2xf32, #tpu.memory_space<vmem>>, vector<2x2xf32>
      tpu.vector_store %arg6[%c0_15, %c0_16], %38 {strides = array<i32>} : memref<2x2xf32, #tpu.memory_space<vmem>>, vector<2x2xf32>,
      %c2048_i32 = arith.constant 2048 : i32
      %40 = arith.muli %arg1, %c2048_i32 : i32
      %41 = tpu.assume_multiple %40, 2048 : i32
      %c0_17 = arith.constant 0 : index
      %42 = arith.index_cast %41 : i32 to index
      %43 = vector.load %arg8[%c0_17, %42] : memref<2x2048xf32, #tpu.memory_space<vmem>>, vector<2x2048xf32>
      tpu.vector_store %arg8[%c0_17, %42], %9 {strides = array<i32>} : memref<2x2048xf32, #tpu.memory_space<vmem>>, vector<2x2048xf32>,
      %c0_i32_18 = arith.constant 0 : i32
      %44 = arith.cmpi eq, %arg1, %c0_i32_18 : i32
      %45 = arith.extui %44 : i1 to i32
      %c0_i32_19 = arith.constant 0 : i32
      %46 = arith.cmpi ne, %45, %c0_i32_19 : i32
      scf.if %46 {
        %c0_20 = arith.constant 0 : index
        %c0_21 = arith.constant 0 : index
        %47 = vector.load %arg6[%c0_20, %c0_21] : memref<2x2xf32, #tpu.memory_space<vmem>>, vector<2x2xf32>
        %48 = tpu.iota {dimensions = array<i32: 1>} : vector<2x2xi32>
        %c0_i32_22 = arith.constant 0 : i32
        %49 = vector.broadcast %c0_i32_22 : i32 to vector<2x2xi32>
        %50 = arith.cmpi eq, %48, %49 : vector<2x2xi32>
        %c0_23 = arith.constant 0 : index
        %51 = memref.load %arg2[%c0_23] : memref<2xf32, #tpu.memory_space<smem>>
        %cst_24 = arith.constant 0.000000e+00 : f32
        %52 = vector.broadcast %51 : f32 to vector<2x2xf32>
        %53 = vector.broadcast %cst_24 : f32 to vector<2x2xf32>
        %54 = arith.select %50, %52, %53 : vector<2x2xi1>, vector<2x2xf32>
        %55 = arith.addf %47, %54 : vector<2x2xf32>
        %c1_i32_25 = arith.constant 1 : i32
        %56 = vector.broadcast %c1_i32_25 : i32 to vector<2x2xi32>
        %57 = arith.cmpi eq, %48, %56 : vector<2x2xi32>
        %c1 = arith.constant 1 : index
        %58 = memref.load %arg2[%c1] : memref<2xf32, #tpu.memory_space<smem>>
        %cst_26 = arith.constant 0.000000e+00 : f32
        %59 = vector.broadcast %58 : f32 to vector<2x2xf32>
        %60 = vector.broadcast %cst_26 : f32 to vector<2x2xf32>
        %61 = arith.select %57, %59, %60 : vector<2x2xi1>, vector<2x2xf32>
        %62 = arith.addf %55, %61 : vector<2x2xf32>
        %cst_27 = arith.constant dense<0xFF800000> : vector<2xf32>
        %63 = vector.multi_reduction <maximumf>, %62, %cst_27 [1] : vector<2x2xf32> to vector<2xf32>
        %64 = vector.shape_cast %63 : vector<2xf32> to vector<2x1xf32>
        %65 = vector.broadcast %64 : vector<2x1xf32> to vector<2x2xf32>
        %66 = arith.subf %62, %65 : vector<2x2xf32>
        %67 = math.exp %66 : vector<2x2xf32>
        %cst_28 = arith.constant dense<0.000000e+00> : vector<2xf32>
        %68 = vector.multi_reduction <add>, %67, %cst_28 [1] : vector<2x2xf32> to vector<2xf32>
        %69 = vector.shape_cast %68 : vector<2xf32> to vector<2x1xf32>
        %70 = vector.broadcast %69 : vector<2x1xf32> to vector<2x2xf32>
        %71 = arith.divf %67, %70 : vector<2x2xf32>
        %c0_29 = arith.constant 0 : index
        %c0_30 = arith.constant 0 : index
        %72 = vector.load %arg7[%c0_29, %c0_30] : memref<2x2xf32, #tpu.memory_space<vmem>>, vector<2x2xf32>
        tpu.vector_store %arg7[%c0_29, %c0_30], %71 {strides = array<i32>} : memref<2x2xf32, #tpu.memory_space<vmem>>, vector<2x2xf32>,
      } else {
      }
    } else {
    }
    %c1_i32 = arith.constant 1 : i32
    %3 = arith.cmpi eq, %arg0, %c1_i32 : i32
    %4 = arith.extui %3 : i1 to i32
    %c0_i32_1 = arith.constant 0 : i32
    %5 = arith.cmpi ne, %4, %c0_i32_1 : i32
    scf.if %5 {
      %c0 = arith.constant 0 : index
      %c0_2 = arith.constant 0 : index
      %6 = vector.load %arg7[%c0, %c0_2] : memref<2x2xf32, #tpu.memory_space<vmem>>, vector<2x2xf32>
      %7 = vector.extract_strided_slice %6 {offsets = [0, 0], sizes = [2, 1], strides = [1, 1]} : vector<2x2xf32> to vector<2x1xf32>
      %c1024_i32 = arith.constant 1024 : i32
      %8 = arith.muli %arg1, %c1024_i32 : i32
      %c0_i32_3 = arith.constant 0 : i32
      %9 = arith.addi %c0_i32_3, %8 : i32
      %10 = tpu.assume_multiple %9, 1024 : i32
      %c0_4 = arith.constant 0 : index
      %11 = arith.index_cast %10 : i32 to index
      %12 = vector.load %arg8[%c0_4, %11] : memref<2x2048xf32, #tpu.memory_space<vmem>>, vector<2x1024xf32>
      %13 = vector.broadcast %7 : vector<2x1xf32> to vector<2x1024xf32>
      %14 = arith.mulf %13, %12 : vector<2x1024xf32>
      %15 = vector.extract_strided_slice %6 {offsets = [0, 1], sizes = [2, 1], strides = [1, 1]} : vector<2x2xf32> to vector<2x1xf32>
      %c1024_i32_5 = arith.constant 1024 : i32
      %16 = arith.muli %arg1, %c1024_i32_5 : i32
      %c1024_i32_6 = arith.constant 1024 : i32
      %17 = arith.addi %c1024_i32_6, %16 : i32
      %18 = tpu.assume_multiple %17, 1024 : i32
      %c0_7 = arith.constant 0 : index
      %19 = arith.index_cast %18 : i32 to index
      %20 = vector.load %arg8[%c0_7, %19] : memref<2x2048xf32, #tpu.memory_space<vmem>>, vector<2x1024xf32>
      %21 = vector.broadcast %15 : vector<2x1xf32> to vector<2x1024xf32>
      %22 = arith.mulf %21, %20 : vector<2x1024xf32>
      %23 = arith.addf %14, %22 : vector<2x1024xf32>
      %c0_8 = arith.constant 0 : index
      %c0_9 = arith.constant 0 : index
      %24 = vector.load %arg5[%c0_8, %c0_9] : memref<2x1024xf32, #tpu.memory_space<vmem>>, vector<2x1024xf32>
      tpu.vector_store %arg5[%c0_8, %c0_9], %23 {strides = array<i32>} : memref<2x1024xf32, #tpu.memory_space<vmem>>, vector<2x1024xf32>,
    } else {
    }
    return
  }
  func.func @transform_0(%arg0: i32, %arg1: i32) -> i32 {
    %c0_i32 = arith.constant 0 : i32
    %c0_i32_0 = arith.constant 0 : i32
    return %c0_i32 : i32
  }
  func.func @transform_1(%arg0: i32, %arg1: i32) -> (i32, i32) {
    %c1_i32 = arith.constant 1 : i32
    %0 = arith.subi %c1_i32, %arg0 : i32
    %1 = arith.muli %arg1, %0 : i32
    %c0_i32 = arith.constant 0 : i32
    %2 = arith.muli %c0_i32, %arg0 : i32
    %3 = arith.addi %1, %2 : i32
    %c0_i32_0 = arith.constant 0 : i32
    %c0_i32_1 = arith.constant 0 : i32
    return %c0_i32_0, %3 : i32, i32
  }
  func.func @transform_2(%arg0: i32, %arg1: i32) -> (i32, i32) {
    %c1_i32 = arith.constant 1 : i32
    %0 = arith.subi %c1_i32, %arg0 : i32
    %1 = arith.muli %arg1, %0 : i32
    %c0_i32 = arith.constant 0 : i32
    %2 = arith.muli %c0_i32, %arg0 : i32
    %3 = arith.addi %1, %2 : i32
    %c0_i32_0 = arith.constant 0 : i32
    %c0_i32_1 = arith.constant 0 : i32
    return %c0_i32_0, %3 : i32, i32
  }
  func.func @transform_3(%arg0: i32, %arg1: i32) -> (i32, i32) {
    %0 = arith.muli %arg1, %arg0 : i32
    %c0_i32 = arith.constant 0 : i32
    %c0_i32_0 = arith.constant 0 : i32
    return %c0_i32, %0 : i32, i32
  }
}

</mosaic_0001>

<llo_original>
// kernel: tpu_custom_call.1
$region0: #{tpu_custom_call.1}
  #allocation0 [shape = 'u32[]', space=smem, size = 0x4, offset = 0x4, fixed_abs, tag = 'smem constant byte address 0x4 - core index']
  #allocation1 [shape = 'u32[144,128]{1,0:T(1,128)}', space=vmem, size = 0x12000, scoped, tag = 'internal scratch']
  #allocation2 [shape = 'f32[2,2]{1,0:T(2,128)}', space=vmem, size = 0x400, scoped, tag = 'scratch operand']
  #allocation3 [shape = 'f32[2,2]{1,0:T(2,128)}', space=vmem, size = 0x400, scoped, tag = 'scratch operand']
  #allocation4 [shape = 'f32[2,2048]{1,0:T(2,128)}', space=vmem, size = 0x4000, scoped, tag = 'scratch operand']
  %s0 = inlined_call_operand.hbm [shape: f32[2], index: 0, kind: input, shape index: {}]
  %s1 = inlined_call_operand.hbm [shape: f32[2,2048], index: 1, kind: input, shape index: {}]
  %s2 = inlined_call_operand.hbm [shape: f32[2,2048], index: 2, kind: input, shape index: {}]
  %s3 = inlined_call_operand.hbm [shape: f32[2,1024], index: 3, kind: output, shape index: {}]
  %s4 = sld [smem:[#allocation0]]
  $region73: #{tpu_custom_call.1} parent=0
    _
  %s6 = ssub.s32 1, %s4
  %s7 = scalar_select 0, %s6, %s4
  $region1: #{tpu_custom_call.1} parent=0
    #allocation5 [shape = 'u8[512]{0}', space=smem, size = 0x200, scoped, tag = 'input window, operand 0, single buffered']
    #allocation6 [shape = 's32[2]{0}', space=sflag, size = 0x8, scoped, tag = 'scoped memory for tpu_custom_call.1']
    #allocation7 [shape = 's32[2]{0}', space=sflag, size = 0x8, scoped, tag = 'scoped memory for tpu_custom_call.1']
    #allocation8 [shape = 's32[2]{0}', space=sflag, size = 0x8, scoped, tag = 'scoped memory for tpu_custom_call.1']
    #allocation9 [shape = 'u8[32768]{0}', space=vmem, size = 0x8000, scoped, tag = 'input window, operand 1']
    #allocation10 [shape = 'u8[32768]{0}', space=vmem, size = 0x8000, scoped, tag = 'input window, operand 2']
    #allocation11 [shape = 's32[2]{0}', space=sflag, size = 0x8, scoped, tag = 'scoped memory for tpu_custom_call.1']
    #allocation12 [shape = 'u8[16384]{0}', space=vmem, size = 0x4000, scoped, tag = 'output window, operand 0']
    %8 = vsyncpa [#allocation8], 0
    %9 = vsyncpa [#allocation6], 0
    %s10 = scalar_lea.sflag [#allocation6], 1
    %11 = vsyncpa %s10, 0
    %12 = vsyncpa [#allocation11], 0
    %s13 = scalar_lea.sflag [#allocation11], 1
    %14 = vsyncpa %s13, 0
    %15 = vsyncpa [#allocation7], 0
    %s16 = scalar_lea.sflag [#allocation7], 1
    %17 = vsyncpa %s16, 0
    loop: start=0, step=1, limit=4
    $region2: #{tpu_custom_call.1} parent=1 // loop_pre_header
      _
    $region3: #{tpu_custom_call.1} parent=1 // loop_header
      %s19 = sphi 0, %s23
      %p20 = scmp.ge.s32.totalorder %s19, 4
      %s26 = sphi 0, %s38
      %s27 = sphi 0, %s34
      %s28 = sphi 0, %s26
      %s29 = sphi 0, %s27
      %s30 = sphi 0, %s28
      %s31 = sphi 0, %s29
      %s39 = sphi 0, %s39
      %s41 = sphi 0, %s39
      %s42 = sphi 0, %s41
      %s56 = sphi 0, %s42
      %s66 = sphi 0, %s68
      %s69 = sphi 0, %s66
      %s70 = sphi 0, %s69
      %s86 = sphi 0, %s70
      %s96 = sphi 0, %s98
      %s99 = sphi 0, %s96
      %s100 = sphi 0, %s99
      %s116 = sphi 0, %s100
      %s124 = sphi 0, %s126
      %s127 = sphi 0, %s124
      %s128 = sphi 0, %s127
      %s144 = sphi 0, %s128
    $region4: #{tpu_custom_call.1} parent=1 // loop_header_branch
      %22 = sbr.rel (%p20) target = $region8
    $region5: #{tpu_custom_call.1} parent=1 // loop_body
      %s24 = ssub.s32 %s19, 1
      %s25 = ssub.s32 %s19, 2
      %s32 = sadd.s32 1, %s27
      %p33 = scmp.ge.s32.totalorder %s32, 1
      %s34 = scalar_select %p33, 0, %s32
      %s35 = sadd.s32 1, %s26
      %s36 = scalar_select %p33, %s35, %s26
      %p37 = scmp.ge.s32.totalorder %s36, 2
      %s38 = scalar_select %p37, 0, %s36
      %s40 = sadd.s32 %s39, 1
      %p43 = scmp.eq.s32.totalorder %s19, 1
      %p44 = scmp.ne.s32.totalorder %s39, %s41
      %p45 = scmp.eq.s32.totalorder %s19, 0
      %p46 = por %p44, %p45
      %p47 = scmp.ne.s32.totalorder %s39, %s41
      %p48 = scmp.eq.s32.totalorder %s24, 1
      %p49 = por %p47, %p48
      %p50 = scmp.ne.s32.totalorder %s41, %s42
      %p51 = scmp.eq.s32.totalorder %s24, 0
      %p52 = por %p50, %p51
      %p53 = scmp.ne.s32.totalorder %s41, %s42
      %p54 = scmp.eq.s32.totalorder %s25, 1
      %p55 = por %p53, %p54
      %p57 = scmp.ne.s32.totalorder %s42, %s56
      %p58 = scmp.eq.s32.totalorder %s25, 0
      %p59 = por %p57, %p58
      %s60 = ssub.s32 1, %s26
      %s61 = smul.u32 %s27, %s60
      %s62 = ssub.s32 1, %s38
      %s63 = smul.u32 %s34, %s62
      %s64 = ssub.s32 %s61, %s63
      %p65 = scmp.eq.s32.totalorder %s64, 0
      %s67 = sadd.s32 %s66, 1
      %s68 = scalar_select %p65, %s66, %s67
      %p71 = pneg %p65
      %p72 = scmp.eq.s32.totalorder %s19, 1
      %p73 = por %p71, %p72
      %p74 = scmp.ne.s32.totalorder %s66, %s69
      %p75 = scmp.eq.s32.totalorder %s19, 0
      %p76 = por %p74, %p75
      %p77 = scmp.ne.s32.totalorder %s66, %s69
      %p78 = scmp.eq.s32.totalorder %s24, 1
      %p79 = por %p77, %p78
      %p80 = scmp.ne.s32.totalorder %s69, %s70
      %p81 = scmp.eq.s32.totalorder %s24, 0
      %p82 = por %p80, %p81
      %p83 = scmp.ne.s32.totalorder %s69, %s70
      %p84 = scmp.eq.s32.totalorder %s25, 1
      %p85 = por %p83, %p84
      %p87 = scmp.ne.s32.totalorder %s70, %s86
      %p88 = scmp.eq.s32.totalorder %s25, 0
      %p89 = por %p87, %p88
      %s90 = ssub.s32 1, %s26
      %s91 = smul.u32 %s27, %s90
      %s92 = ssub.s32 1, %s38
      %s93 = smul.u32 %s34, %s92
      %s94 = ssub.s32 %s91, %s93
      %p95 = scmp.eq.s32.totalorder %s94, 0
      %s97 = sadd.s32 %s96, 1
      %s98 = scalar_select %p95, %s96, %s97
      %p101 = pneg %p95
      %p102 = scmp.eq.s32.totalorder %s19, 1
      %p103 = por %p101, %p102
      %p104 = scmp.ne.s32.totalorder %s96, %s99
      %p105 = scmp.eq.s32.totalorder %s19, 0
      %p106 = por %p104, %p105
      %p107 = scmp.ne.s32.totalorder %s96, %s99
      %p108 = scmp.eq.s32.totalorder %s24, 1
      %p109 = por %p107, %p108
      %p110 = scmp.ne.s32.totalorder %s99, %s100
      %p111 = scmp.eq.s32.totalorder %s24, 0
      %p112 = por %p110, %p111
      %p113 = scmp.ne.s32.totalorder %s99, %s100
      %p114 = scmp.eq.s32.totalorder %s25, 1
      %p115 = por %p113, %p114
      %p117 = scmp.ne.s32.totalorder %s100, %s116
      %p118 = scmp.eq.s32.totalorder %s25, 0
      %p119 = por %p117, %p118
      %s120 = smul.u32 %s27, %s26
      %s121 = smul.u32 %s34, %s38
      %s122 = ssub.s32 %s120, %s121
      %p123 = scmp.eq.s32.totalorder %s122, 0
      %s125 = sadd.s32 %s124, 1
      %s126 = scalar_select %p123, %s124, %s125
      %p129 = pneg %p123
      %p130 = scmp.eq.s32.totalorder %s19, 1
      %p131 = por %p129, %p130
      %p132 = scmp.ne.s32.totalorder %s124, %s127
      %p133 = scmp.eq.s32.totalorder %s19, 0
      %p134 = por %p132, %p133
      %p135 = scmp.ne.s32.totalorder %s124, %s127
      %p136 = scmp.eq.s32.totalorder %s24, 1
      %p137 = por %p135, %p136
      %p138 = scmp.ne.s32.totalorder %s127, %s128
      %p139 = scmp.eq.s32.totalorder %s24, 0
      %p140 = por %p138, %p139
      %p141 = scmp.ne.s32.totalorder %s127, %s128
      %p142 = scmp.eq.s32.totalorder %s25, 1
      %p143 = por %p141, %p142
      %p145 = scmp.ne.s32.totalorder %s128, %s144
      %p146 = scmp.eq.s32.totalorder %s25, 0
      %p147 = por %p145, %p146
      %p148 = scmp.le.s32.totalorder 1, %s19
      %p149 = scmp.lt.s32.totalorder %s19, 3
      %p150 = pnand %p148, %p149
      %p151 = pneg %p150
      // Predicated region
      $region9: #{tpu_custom_call.1} parent=5 // pred_check
        _
      $region10: #{tpu_custom_call.1} parent=5 // pred_check_branch
        %153 = sbr.rel (%p150) target = $region12
      $region11: #{tpu_custom_call.1} parent=5 // pred_region
        %s154 = ssub.s32 %s19, 1
        // Predicated region
        $region13: #{tpu_custom_call.1} parent=11 // pred_check
          %p155 = pneg %p52
        $region14: #{tpu_custom_call.1} parent=11 // pred_check_branch
          %157 = sbr.rel (%p155) target = $region16
        $region15: #{tpu_custom_call.1} parent=11 // pred_region
          %s159 = ssub.s32 16, 16
          %160 = vsyncadd [#allocation8], %s159
          %163 = dma.hbm_to_smem %s0, 16, [#allocation5], [#allocation8]
        $region16: #{tpu_custom_call.1} parent=11 // pred_fallthru
          _
      $region12: #{tpu_custom_call.1} parent=5 // pred_fallthru
        _
      %p164 = scmp.lt.s32.totalorder %s19, 2
      // Predicated region
      $region17: #{tpu_custom_call.1} parent=5 // pred_check
        %p165 = pneg %p164
      $region18: #{tpu_custom_call.1} parent=5 // pred_check_branch
        %167 = sbr.rel (%p165) target = $region20
      $region19: #{tpu_custom_call.1} parent=5 // pred_region
        // Predicated region
        $region21: #{tpu_custom_call.1} parent=19 // pred_check
          %p168 = pneg %p76
        $region22: #{tpu_custom_call.1} parent=19 // pred_check_branch
          %170 = sbr.rel (%p168) target = $region24
        $region23: #{tpu_custom_call.1} parent=19 // pred_region
          %s171 = sand.u32 %s66, 1
          %s172 = scalar_lea.sflag [#allocation6], %s171
          %s173 = sand.u32 %s66, 1
          %s174 = smul.addr %s173, 32
          %s175 = scalar_lea.vmem [#allocation9], %s174
          %s176 = ssub.s32 1, %s26
          %s177 = smul.u32 %s27, %s176
          %s178 = smul.u32 16, %s177
          %s180 = ssub.s32 512, 512
          %181 = vsyncadd %s172, %s180
          %s182 = smul.addr %s178, 32
          %s183 = scalar_lea.hbm %s1, %s182
          %s185 = sshll.u32 %s175, 4
          %s186 = int_to_ptr.vmem [resolvable:$true] %s185
          %188 = dma.hbm_to_vmem [thread:$0]  %s183, 512, %s186, %s172
        $region24: #{tpu_custom_call.1} parent=19 // pred_fallthru
          _
        // Predicated region
        $region25: #{tpu_custom_call.1} parent=19 // pred_check
          %p189 = pneg %p106
        $region26: #{tpu_custom_call.1} parent=19 // pred_check_branch
          %191 = sbr.rel (%p189) target = $region28
        $region27: #{tpu_custom_call.1} parent=19 // pred_region
          %s192 = sand.u32 %s96, 1
          %s193 = scalar_lea.sflag [#allocation11], %s192
          %s194 = sand.u32 %s96, 1
          %s195 = smul.addr %s194, 32
          %s196 = scalar_lea.vmem [#allocation10], %s195
          %s197 = ssub.s32 1, %s26
          %s198 = smul.u32 %s27, %s197
          %s199 = smul.u32 16, %s198
          %s201 = ssub.s32 512, 512
          %202 = vsyncadd %s193, %s201
          %s203 = smul.addr %s199, 32
          %s204 = scalar_lea.hbm %s2, %s203
          %s206 = sshll.u32 %s196, 4
          %s207 = int_to_ptr.vmem [resolvable:$true] %s206
          %209 = dma.hbm_to_vmem [thread:$0]  %s204, 512, %s207, %s193
        $region28: #{tpu_custom_call.1} parent=19 // pred_fallthru
          _
      $region20: #{tpu_custom_call.1} parent=5 // pred_fallthru
        _
      %p210 = scmp.le.s32.totalorder 1, %s19
      %p211 = scmp.lt.s32.totalorder %s19, 3
      %p212 = pnand %p210, %p211
      %p213 = pneg %p212
      // Predicated region
      $region29: #{tpu_custom_call.1} parent=5 // pred_check
        _
      $region30: #{tpu_custom_call.1} parent=5 // pred_check_branch
        %215 = sbr.rel (%p212) target = $region32
      $region31: #{tpu_custom_call.1} parent=5 // pred_region
        %s216 = ssub.s32 %s19, 1
        // Predicated region
        $region33: #{tpu_custom_call.1} parent=31 // pred_check
          %p217 = pneg %p52
        $region34: #{tpu_custom_call.1} parent=31 // pred_check_branch
          %219 = sbr.rel (%p217) target = $region36
        $region35: #{tpu_custom_call.1} parent=31 // pred_region
          %220 = dma.done [#allocation8], 16
        $region36: #{tpu_custom_call.1} parent=31 // pred_fallthru
          _
        %s221 = sand.u32 %s69, 1
        %s222 = scalar_lea.sflag [#allocation6], %s221
        %s223 = sand.u32 %s69, 1
        %s224 = smul.addr %s223, 32
        %s225 = scalar_lea.vmem [#allocation9], %s224
        // Predicated region
        $region37: #{tpu_custom_call.1} parent=31 // pred_check
          %p226 = pneg %p82
        $region38: #{tpu_custom_call.1} parent=31 // pred_check_branch
          %228 = sbr.rel (%p226) target = $region40
        $region39: #{tpu_custom_call.1} parent=31 // pred_region
          %229 = dma.done %s222, 512
        $region40: #{tpu_custom_call.1} parent=31 // pred_fallthru
          _
        %s230 = sand.u32 %s99, 1
        %s231 = scalar_lea.sflag [#allocation11], %s230
        %s232 = sand.u32 %s99, 1
        %s233 = smul.addr %s232, 32
        %s234 = scalar_lea.vmem [#allocation10], %s233
        // Predicated region
        $region41: #{tpu_custom_call.1} parent=31 // pred_check
          %p235 = pneg %p112
        $region42: #{tpu_custom_call.1} parent=31 // pred_check_branch
          %237 = sbr.rel (%p235) target = $region44
        $region43: #{tpu_custom_call.1} parent=31 // pred_region
          %238 = dma.done %s231, 512
        $region44: #{tpu_custom_call.1} parent=31 // pred_fallthru
          _
        %239 = sfence
        %p240 = pneg %p52
        %p241 = pneg %p49
        %s242 = sand.u32 %s69, 1
        %s243 = scalar_lea.sflag [#allocation6], %s242
        %s244 = sand.u32 %s69, 1
        %s245 = smul.addr %s244, 32
        %s246 = scalar_lea.vmem [#allocation9], %s245
        %p247 = pneg %p82
        %p248 = pneg %p79
        %s249 = sand.u32 %s99, 1
        %s250 = scalar_lea.sflag [#allocation11], %s249
        %s251 = sand.u32 %s99, 1
        %s252 = smul.addr %s251, 32
        %s253 = scalar_lea.vmem [#allocation10], %s252
        %p254 = pneg %p112
        %p255 = pneg %p109
        %p256 = pneg %p140
        %p257 = pneg %p137
        %s258 = sand.u32 %s127, 1
        %s259 = scalar_lea.sflag [#allocation7], %s258
        %s260 = sand.u32 %s127, 1
        %s261 = smul.addr %s260, 16
        %s262 = scalar_lea.vmem [#allocation12], %s261
        %s263 = ssub.s32 1, %s28
        %s264 = smul.u32 %s29, %s263
        %s265 = smul.u32 16, %s264
        %s266 = ssub.s32 1, %s28
        %s267 = smul.u32 %s29, %s266
        %s268 = smul.u32 16, %s267
        %s269 = smul.u32 %s29, %s28
        %s270 = smul.u32 8, %s269
        %p271 = scmp.eq.s32.totalorder %s28, 0
        // Predicated region
        $region45: #{tpu_custom_call.1} parent=31 // pred_check
          %p272 = pneg %p271
        $region46: #{tpu_custom_call.1} parent=31 // pred_check_branch
          %274 = sbr.rel (%p272) target = $region48
        $region47: #{tpu_custom_call.1} parent=31 // pred_region
          %p275 = scmp.eq.s32.totalorder %s29, 0
          // Predicated region
          $region49: #{tpu_custom_call.1} parent=47 // pred_check
            %p276 = pneg %p275
          $region50: #{tpu_custom_call.1} parent=47 // pred_check_branch
            %278 = sbr.rel (%p276) target = $region52
          $region51: #{tpu_custom_call.1} parent=47 // pred_region
            %vm279 = vcmask 9216
            %280 = vst.msk [vmem:[#allocation2] sm:$0x3] %vm279, 0.0
          $region52: #{tpu_custom_call.1} parent=47 // pred_fallthru
            _
          %v281 = vld [vmem:[%s225] sm:$0xff]
          %v282 = vld [vmem:[%s225 + $0x8] sm:$0xff]
          %v283 = vld [vmem:[%s225 + $0x10] sm:$0xff]
          %v284 = vld [vmem:[%s225 + $0x18] sm:$0xff]
          %v285 = vld [vmem:[%s234] sm:$0xff]
          %v286 = vld [vmem:[%s234 + $0x8] sm:$0xff]
          %v287 = vld [vmem:[%s234 + $0x10] sm:$0xff]
          %v288 = vld [vmem:[%s234 + $0x18] sm:$0xff]
          %v289 = vlaneseq
          %v290 = vand.u32 %v289, 127
          %v295 = vlaneseq
          %v296 = vshrl.u32 %v295, 7
          %v297 = vsub.s32 0, %v296
          %v298 = vrot.slane %v285, %v297
          %v299 = vlaneseq
          %v300 = vshrl.u32 %v299, 7
          %v301 = vsub.s32 2, %v300
          %v302 = vrot.slane %v285, %v301
          %v303 = vlaneseq
          %v304 = vshrl.u32 %v303, 7
          %v305 = vsub.s32 4, %v304
          %v306 = vrot.slane %v285, %v305
          %v307 = vlaneseq
          %v308 = vshrl.u32 %v307, 7
          %v309 = vsub.s32 6, %v308
          %v310 = vrot.slane %v285, %v309
          %v311 = vlaneseq
          %v312 = vshrl.u32 %v311, 7
          %v313 = vsub.s32 0, %v312
          %v314 = vrot.slane %v286, %v313
          %v315 = vlaneseq
          %v316 = vshrl.u32 %v315, 7
          %v317 = vsub.s32 2, %v316
          %v318 = vrot.slane %v286, %v317
          %v319 = vlaneseq
          %v320 = vshrl.u32 %v319, 7
          %v321 = vsub.s32 4, %v320
          %v322 = vrot.slane %v286, %v321
          %v323 = vlaneseq
          %v324 = vshrl.u32 %v323, 7
          %v325 = vsub.s32 6, %v324
          %v326 = vrot.slane %v286, %v325
          %v327 = vlaneseq
          %v328 = vshrl.u32 %v327, 7
          %v329 = vsub.s32 0, %v328
          %v330 = vrot.slane %v287, %v329
          %v331 = vlaneseq
          %v332 = vshrl.u32 %v331, 7
          %v333 = vsub.s32 2, %v332
          %v334 = vrot.slane %v287, %v333
          %v335 = vlaneseq
          %v336 = vshrl.u32 %v335, 7
          %v337 = vsub.s32 4, %v336
          %v338 = vrot.slane %v287, %v337
          %v339 = vlaneseq
          %v340 = vshrl.u32 %v339, 7
          %v341 = vsub.s32 6, %v340
          %v342 = vrot.slane %v287, %v341
          %v343 = vlaneseq
          %v344 = vshrl.u32 %v343, 7
          %v345 = vsub.s32 0, %v344
          %v346 = vrot.slane %v288, %v345
          %v347 = vlaneseq
          %v348 = vshrl.u32 %v347, 7
          %v349 = vsub.s32 2, %v348
          %v350 = vrot.slane %v288, %v349
          %v351 = vlaneseq
          %v352 = vshrl.u32 %v351, 7
          %v353 = vsub.s32 4, %v352
          %v354 = vrot.slane %v288, %v353
          %v355 = vlaneseq
          %v356 = vshrl.u32 %v355, 7
          %v357 = vsub.s32 6, %v356
          %v358 = vrot.slane %v288, %v357
          %v375 = vlaneseq
          %v376 = vshrl.u32 %v375, 7
          %v377 = vsub.s32 0, %v376
          %v378 = vrot.slane %v298, %v377
          %v379 = vlaneseq
          %v380 = vshrl.u32 %v379, 7
          %v381 = vsub.s32 0, %v380
          %v382 = vrot.slane %v302, %v381
          %v383 = vlaneseq
          %v384 = vshrl.u32 %v383, 7
          %v385 = vsub.s32 0, %v384
          %v386 = vrot.slane %v306, %v385
          %v387 = vlaneseq
          %v388 = vshrl.u32 %v387, 7
          %v389 = vsub.s32 0, %v388
          %v390 = vrot.slane %v310, %v389
          %v391 = vlaneseq
          %v392 = vshrl.u32 %v391, 7
          %v393 = vsub.s32 0, %v392
          %v394 = vrot.slane %v314, %v393
          %v395 = vlaneseq
          %v396 = vshrl.u32 %v395, 7
          %v397 = vsub.s32 0, %v396
          %v398 = vrot.slane %v318, %v397
          %v399 = vlaneseq
          %v400 = vshrl.u32 %v399, 7
          %v401 = vsub.s32 0, %v400
          %v402 = vrot.slane %v322, %v401
          %v403 = vlaneseq
          %v404 = vshrl.u32 %v403, 7
          %v405 = vsub.s32 0, %v404
          %v406 = vrot.slane %v326, %v405
          %v407 = vlaneseq
          %v408 = vshrl.u32 %v407, 7
          %v409 = vsub.s32 0, %v408
          %v410 = vrot.slane %v330, %v409
          %v411 = vlaneseq
          %v412 = vshrl.u32 %v411, 7
          %v413 = vsub.s32 0, %v412
          %v414 = vrot.slane %v334, %v413
          %v415 = vlaneseq
          %v416 = vshrl.u32 %v415, 7
          %v417 = vsub.s32 0, %v416
          %v418 = vrot.slane %v338, %v417
          %v419 = vlaneseq
          %v420 = vshrl.u32 %v419, 7
          %v421 = vsub.s32 0, %v420
          %v422 = vrot.slane %v342, %v421
          %v423 = vlaneseq
          %v424 = vshrl.u32 %v423, 7
          %v425 = vsub.s32 0, %v424
          %v426 = vrot.slane %v346, %v425
          %v427 = vlaneseq
          %v428 = vshrl.u32 %v427, 7
          %v429 = vsub.s32 0, %v428
          %v430 = vrot.slane %v350, %v429
          %v431 = vlaneseq
          %v432 = vshrl.u32 %v431, 7
          %v433 = vsub.s32 0, %v432
          %v434 = vrot.slane %v354, %v433
          %v435 = vlaneseq
          %v436 = vshrl.u32 %v435, 7
          %v437 = vsub.s32 0, %v436
          %v438 = vrot.slane %v358, %v437
          %v455 = vcombine.low %v378, %v382
          %v456 = vcombine.low %v386, %v390
          %v458 = vunpack.c.l.s4 1983009808
          %v459 = vunpack.c.0.s8 %v458
          %v460 = vlaneseq
          %v461 = vshrl.u32 %v460, 7
          %v462 = vsub.s32 %v459, %v461
          %v463 = vrot.slane %v455, %v462
          %v465 = vunpack.c.l.s4 1983009808
          %v466 = vunpack.c.0.s8 %v465
          %v467 = vlaneseq
          %v468 = vshrl.u32 %v467, 7
          %v469 = vsub.s32 %v466, %v468
          %v470 = vrot.slane %v456, %v469
          %v471 = vcombine.low %v463, %v470
          %v472 = vcombine.low %v394, %v398
          %v473 = vcombine.low %v402, %v406
          %v475 = vunpack.c.l.s4 1983009808
          %v476 = vunpack.c.0.s8 %v475
          %v477 = vlaneseq
          %v478 = vshrl.u32 %v477, 7
          %v479 = vsub.s32 %v476, %v478
          %v480 = vrot.slane %v472, %v479
          %v482 = vunpack.c.l.s4 1983009808
          %v483 = vunpack.c.0.s8 %v482
          %v484 = vlaneseq
          %v485 = vshrl.u32 %v484, 7
          %v486 = vsub.s32 %v483, %v485
          %v487 = vrot.slane %v473, %v486
          %v488 = vcombine.low %v480, %v487
          %v489 = vcombine.low %v410, %v414
          %v490 = vcombine.low %v418, %v422
          %v492 = vunpack.c.l.s4 1983009808
          %v493 = vunpack.c.0.s8 %v492
          %v494 = vlaneseq
          %v495 = vshrl.u32 %v494, 7
          %v496 = vsub.s32 %v493, %v495
          %v497 = vrot.slane %v489, %v496
          %v499 = vunpack.c.l.s4 1983009808
          %v500 = vunpack.c.0.s8 %v499
          %v501 = vlaneseq
          %v502 = vshrl.u32 %v501, 7
          %v503 = vsub.s32 %v500, %v502
          %v504 = vrot.slane %v490, %v503
          %v505 = vcombine.low %v497, %v504
          %v506 = vcombine.low %v426, %v430
          %v507 = vcombine.low %v434, %v438
          %v509 = vunpack.c.l.s4 1983009808
          %v510 = vunpack.c.0.s8 %v509
          %v511 = vlaneseq
          %v512 = vshrl.u32 %v511, 7
          %v513 = vsub.s32 %v510, %v512
          %v514 = vrot.slane %v506, %v513
          %v516 = vunpack.c.l.s4 1983009808
          %v517 = vunpack.c.0.s8 %v516
          %v518 = vlaneseq
          %v519 = vshrl.u32 %v518, 7
          %v520 = vsub.s32 %v517, %v519
          %v521 = vrot.slane %v507, %v520
          %v522 = vcombine.low %v514, %v521
          %v527 = vmul.f32 %v281, %v471
          %v528 = vmul.f32 %v282, %v488
          %v529 = vmul.f32 %v283, %v505
          %v530 = vmul.f32 %v284, %v522
          %v535 = vcombine.high %v527, %v527
          %v537 = vunpack.c.l.s4 1983009808
          %v538 = vunpack.c.0.s8 %v537
          %v539 = vlaneseq
          %v540 = vshrl.u32 %v539, 7
          %v541 = vsub.s32 %v538, %v540
          %v542 = vrot.slane %v527, %v541
          %v544 = vunpack.c.l.s4 1983009808
          %v545 = vunpack.c.0.s8 %v544
          %v546 = vlaneseq
          %v547 = vshrl.u32 %v546, 7
          %v548 = vsub.s32 %v545, %v547
          %v549 = vrot.slane %v535, %v548
          %v550 = vcombine.high %v542, %v542
          %v551 = vcombine.high %v549, %v549
          %v552 = vcombine.high %v528, %v528
          %v554 = vunpack.c.l.s4 1983009808
          %v555 = vunpack.c.0.s8 %v554
          %v556 = vlaneseq
          %v557 = vshrl.u32 %v556, 7
          %v558 = vsub.s32 %v555, %v557
          %v559 = vrot.slane %v528, %v558
          %v561 = vunpack.c.l.s4 1983009808
          %v562 = vunpack.c.0.s8 %v561
          %v563 = vlaneseq
          %v564 = vshrl.u32 %v563, 7
          %v565 = vsub.s32 %v562, %v564
          %v566 = vrot.slane %v552, %v565
          %v567 = vcombine.high %v559, %v559
          %v568 = vcombine.high %v566, %v566
          %v569 = vcombine.high %v529, %v529
          %v571 = vunpack.c.l.s4 1983009808
          %v572 = vunpack.c.0.s8 %v571
          %v573 = vlaneseq
          %v574 = vshrl.u32 %v573, 7
          %v575 = vsub.s32 %v572, %v574
          %v576 = vrot.slane %v529, %v575
          %v578 = vunpack.c.l.s4 1983009808
          %v579 = vunpack.c.0.s8 %v578
          %v580 = vlaneseq
          %v581 = vshrl.u32 %v580, 7
          %v582 = vsub.s32 %v579, %v581
          %v583 = vrot.slane %v569, %v582
          %v584 = vcombine.high %v576, %v576
          %v585 = vcombine.high %v583, %v583
          %v586 = vcombine.high %v530, %v530
          %v588 = vunpack.c.l.s4 1983009808
          %v589 = vunpack.c.0.s8 %v588
          %v590 = vlaneseq
          %v591 = vshrl.u32 %v590, 7
          %v592 = vsub.s32 %v589, %v591
          %v593 = vrot.slane %v530, %v592
          %v595 = vunpack.c.l.s4 1983009808
          %v596 = vunpack.c.0.s8 %v595
          %v597 = vlaneseq
          %v598 = vshrl.u32 %v597, 7
          %v599 = vsub.s32 %v596, %v598
          %v600 = vrot.slane %v586, %v599
          %v601 = vcombine.high %v593, %v593
          %v602 = vcombine.high %v600, %v600
          %vm619 = vcmask 1041408
          %v620 = vsel %vm619, %v542, 0.0
          %v621 = vsel %vm619, %v550, 0.0
          %v622 = vadd.f32 %v620, %v621
          %v623 = vsel %vm619, %v549, 0.0
          %v624 = vadd.f32 %v622, %v623
          %v625 = vsel %vm619, %v551, 0.0
          %v626 = vadd.f32 %v624, %v625
          %v627 = vsel %vm619, %v559, 0.0
          %v628 = vadd.f32 %v626, %v627
          %v629 = vsel %vm619, %v567, 0.0
          %v630 = vadd.f32 %v628, %v629
          %v631 = vsel %vm619, %v566, 0.0
          %v632 = vadd.f32 %v630, %v631
          %v633 = vsel %vm619, %v568, 0.0
          %v634 = vadd.f32 %v632, %v633
          %v635 = vsel %vm619, %v576, 0.0
          %v636 = vadd.f32 %v634, %v635
          %v637 = vsel %vm619, %v584, 0.0
          %v638 = vadd.f32 %v636, %v637
          %v639 = vsel %vm619, %v583, 0.0
          %v640 = vadd.f32 %v638, %v639
          %v641 = vsel %vm619, %v585, 0.0
          %v642 = vadd.f32 %v640, %v641
          %v643 = vsel %vm619, %v593, 0.0
          %v644 = vadd.f32 %v642, %v643
          %v645 = vsel %vm619, %v601, 0.0
          %v646 = vadd.f32 %v644, %v645
          %v647 = vsel %vm619, %v600, 0.0
          %v648 = vadd.f32 %v646, %v647
          %v649 = vsel %vm619, %v602, 0.0
          %v650 = vadd.f32 %v648, %v649
          %651 = vadd.xlane.f32.xlu0 %v650
          %v652 = vpop.xlane.xlu0 %651
          %vm653 = vcmp.eq.s32.totalorder %v290, 0
          %v654 = vsel %vm653, %v652, 0.0
          %v655 = vadd.f32 %v654, 0.0
          %v656 = vlaneseq
          %v657 = vshrl.u32 %v656, 7
          %v658 = vsub.s32 1, %v657
          %v659 = vrot.slane %v285, %v658
          %v660 = vlaneseq
          %v661 = vshrl.u32 %v660, 7
          %v662 = vsub.s32 3, %v661
          %v663 = vrot.slane %v285, %v662
          %v664 = vlaneseq
          %v665 = vshrl.u32 %v664, 7
          %v666 = vsub.s32 5, %v665
          %v667 = vrot.slane %v285, %v666
          %v668 = vlaneseq
          %v669 = vshrl.u32 %v668, 7
          %v670 = vsub.s32 7, %v669
          %v671 = vrot.slane %v285, %v670
          %v672 = vlaneseq
          %v673 = vshrl.u32 %v672, 7
          %v674 = vsub.s32 1, %v673
          %v675 = vrot.slane %v286, %v674
          %v676 = vlaneseq
          %v677 = vshrl.u32 %v676, 7
          %v678 = vsub.s32 3, %v677
          %v679 = vrot.slane %v286, %v678
          %v680 = vlaneseq
          %v681 = vshrl.u32 %v680, 7
          %v682 = vsub.s32 5, %v681
          %v683 = vrot.slane %v286, %v682
          %v684 = vlaneseq
          %v685 = vshrl.u32 %v684, 7
          %v686 = vsub.s32 7, %v685
          %v687 = vrot.slane %v286, %v686
          %v688 = vlaneseq
          %v689 = vshrl.u32 %v688, 7
          %v690 = vsub.s32 1, %v689
          %v691 = vrot.slane %v287, %v690
          %v692 = vlaneseq
          %v693 = vshrl.u32 %v692, 7
          %v694 = vsub.s32 3, %v693
          %v695 = vrot.slane %v287, %v694
          %v696 = vlaneseq
          %v697 = vshrl.u32 %v696, 7
          %v698 = vsub.s32 5, %v697
          %v699 = vrot.slane %v287, %v698
          %v700 = vlaneseq
          %v701 = vshrl.u32 %v700, 7
          %v702 = vsub.s32 7, %v701
          %v703 = vrot.slane %v287, %v702
          %v704 = vlaneseq
          %v705 = vshrl.u32 %v704, 7
          %v706 = vsub.s32 1, %v705
          %v707 = vrot.slane %v288, %v706
          %v708 = vlaneseq
          %v709 = vshrl.u32 %v708, 7
          %v710 = vsub.s32 3, %v709
          %v711 = vrot.slane %v288, %v710
          %v712 = vlaneseq
          %v713 = vshrl.u32 %v712, 7
          %v714 = vsub.s32 5, %v713
          %v715 = vrot.slane %v288, %v714
          %v716 = vlaneseq
          %v717 = vshrl.u32 %v716, 7
          %v718 = vsub.s32 7, %v717
          %v719 = vrot.slane %v288, %v718
          %v736 = vlaneseq
          %v737 = vshrl.u32 %v736, 7
          %v738 = vsub.s32 1, %v737
          %v739 = vrot.slane %v659, %v738
          %v740 = vlaneseq
          %v741 = vshrl.u32 %v740, 7
          %v742 = vsub.s32 1, %v741
          %v743 = vrot.slane %v663, %v742
          %v744 = vlaneseq
          %v745 = vshrl.u32 %v744, 7
          %v746 = vsub.s32 1, %v745
          %v747 = vrot.slane %v667, %v746
          %v748 = vlaneseq
          %v749 = vshrl.u32 %v748, 7
          %v750 = vsub.s32 1, %v749
          %v751 = vrot.slane %v671, %v750
          %v752 = vlaneseq
          %v753 = vshrl.u32 %v752, 7
          %v754 = vsub.s32 1, %v753
          %v755 = vrot.slane %v675, %v754
          %v756 = vlaneseq
          %v757 = vshrl.u32 %v756, 7
          %v758 = vsub.s32 1, %v757
          %v759 = vrot.slane %v679, %v758
          %v760 = vlaneseq
          %v761 = vshrl.u32 %v760, 7
          %v762 = vsub.s32 1, %v761
          %v763 = vrot.slane %v683, %v762
          %v764 = vlaneseq
          %v765 = vshrl.u32 %v764, 7
          %v766 = vsub.s32 1, %v765
          %v767 = vrot.slane %v687, %v766
          %v768 = vlaneseq
          %v769 = vshrl.u32 %v768, 7
          %v770 = vsub.s32 1, %v769
          %v771 = vrot.slane %v691, %v770
          %v772 = vlaneseq
          %v773 = vshrl.u32 %v772, 7
          %v774 = vsub.s32 1, %v773
          %v775 = vrot.slane %v695, %v774
          %v776 = vlaneseq
          %v777 = vshrl.u32 %v776, 7
          %v778 = vsub.s32 1, %v777
          %v779 = vrot.slane %v699, %v778
          %v780 = vlaneseq
          %v781 = vshrl.u32 %v780, 7
          %v782 = vsub.s32 1, %v781
          %v783 = vrot.slane %v703, %v782
          %v784 = vlaneseq
          %v785 = vshrl.u32 %v784, 7
          %v786 = vsub.s32 1, %v785
          %v787 = vrot.slane %v707, %v786
          %v788 = vlaneseq
          %v789 = vshrl.u32 %v788, 7
          %v790 = vsub.s32 1, %v789
          %v791 = vrot.slane %v711, %v790
          %v792 = vlaneseq
          %v793 = vshrl.u32 %v792, 7
          %v794 = vsub.s32 1, %v793
          %v795 = vrot.slane %v715, %v794
          %v796 = vlaneseq
          %v797 = vshrl.u32 %v796, 7
          %v798 = vsub.s32 1, %v797
          %v799 = vrot.slane %v719, %v798
          %v816 = vcombine.low %v739, %v743
          %v817 = vcombine.low %v747, %v751
          %v819 = vunpack.c.l.s4 1983009808
          %v820 = vunpack.c.0.s8 %v819
          %v821 = vlaneseq
          %v822 = vshrl.u32 %v821, 7
          %v823 = vsub.s32 %v820, %v822
          %v824 = vrot.slane %v816, %v823
          %v826 = vunpack.c.l.s4 1983009808
          %v827 = vunpack.c.0.s8 %v826
          %v828 = vlaneseq
          %v829 = vshrl.u32 %v828, 7
          %v830 = vsub.s32 %v827, %v829
          %v831 = vrot.slane %v817, %v830
          %v832 = vcombine.low %v824, %v831
          %v833 = vcombine.low %v755, %v759
          %v834 = vcombine.low %v763, %v767
          %v836 = vunpack.c.l.s4 1983009808
          %v837 = vunpack.c.0.s8 %v836
          %v838 = vlaneseq
          %v839 = vshrl.u32 %v838, 7
          %v840 = vsub.s32 %v837, %v839
          %v841 = vrot.slane %v833, %v840
          %v843 = vunpack.c.l.s4 1983009808
          %v844 = vunpack.c.0.s8 %v843
          %v845 = vlaneseq
          %v846 = vshrl.u32 %v845, 7
          %v847 = vsub.s32 %v844, %v846
          %v848 = vrot.slane %v834, %v847
          %v849 = vcombine.low %v841, %v848
          %v850 = vcombine.low %v771, %v775
          %v851 = vcombine.low %v779, %v783
          %v853 = vunpack.c.l.s4 1983009808
          %v854 = vunpack.c.0.s8 %v853
          %v855 = vlaneseq
          %v856 = vshrl.u32 %v855, 7
          %v857 = vsub.s32 %v854, %v856
          %v858 = vrot.slane %v850, %v857
          %v860 = vunpack.c.l.s4 1983009808
          %v861 = vunpack.c.0.s8 %v860
          %v862 = vlaneseq
          %v863 = vshrl.u32 %v862, 7
          %v864 = vsub.s32 %v861, %v863
          %v865 = vrot.slane %v851, %v864
          %v866 = vcombine.low %v858, %v865
          %v867 = vcombine.low %v787, %v791
          %v868 = vcombine.low %v795, %v799
          %v870 = vunpack.c.l.s4 1983009808
          %v871 = vunpack.c.0.s8 %v870
          %v872 = vlaneseq
          %v873 = vshrl.u32 %v872, 7
          %v874 = vsub.s32 %v871, %v873
          %v875 = vrot.slane %v867, %v874
          %v877 = vunpack.c.l.s4 1983009808
          %v878 = vunpack.c.0.s8 %v877
          %v879 = vlaneseq
          %v880 = vshrl.u32 %v879, 7
          %v881 = vsub.s32 %v878, %v880
          %v882 = vrot.slane %v868, %v881
          %v883 = vcombine.low %v875, %v882
          %v888 = vmul.f32 %v281, %v832
          %v889 = vmul.f32 %v282, %v849
          %v890 = vmul.f32 %v283, %v866
          %v891 = vmul.f32 %v284, %v883
          %v896 = vcombine.high %v888, %v888
          %v898 = vunpack.c.l.s4 1983009808
          %v899 = vunpack.c.0.s8 %v898
          %v900 = vlaneseq
          %v901 = vshrl.u32 %v900, 7
          %v902 = vsub.s32 %v899, %v901
          %v903 = vrot.slane %v888, %v902
          %v905 = vunpack.c.l.s4 1983009808
          %v906 = vunpack.c.0.s8 %v905
          %v907 = vlaneseq
          %v908 = vshrl.u32 %v907, 7
          %v909 = vsub.s32 %v906, %v908
          %v910 = vrot.slane %v896, %v909
          %v911 = vcombine.high %v903, %v903
          %v912 = vcombine.high %v910, %v910
          %v913 = vcombine.high %v889, %v889
          %v915 = vunpack.c.l.s4 1983009808
          %v916 = vunpack.c.0.s8 %v915
          %v917 = vlaneseq
          %v918 = vshrl.u32 %v917, 7
          %v919 = vsub.s32 %v916, %v918
          %v920 = vrot.slane %v889, %v919
          %v922 = vunpack.c.l.s4 1983009808
          %v923 = vunpack.c.0.s8 %v922
          %v924 = vlaneseq
          %v925 = vshrl.u32 %v924, 7
          %v926 = vsub.s32 %v923, %v925
          %v927 = vrot.slane %v913, %v926
          %v928 = vcombine.high %v920, %v920
          %v929 = vcombine.high %v927, %v927
          %v930 = vcombine.high %v890, %v890
          %v932 = vunpack.c.l.s4 1983009808
          %v933 = vunpack.c.0.s8 %v932
          %v934 = vlaneseq
          %v935 = vshrl.u32 %v934, 7
          %v936 = vsub.s32 %v933, %v935
          %v937 = vrot.slane %v890, %v936
          %v939 = vunpack.c.l.s4 1983009808
          %v940 = vunpack.c.0.s8 %v939
          %v941 = vlaneseq
          %v942 = vshrl.u32 %v941, 7
          %v943 = vsub.s32 %v940, %v942
          %v944 = vrot.slane %v930, %v943
          %v945 = vcombine.high %v937, %v937
          %v946 = vcombine.high %v944, %v944
          %v947 = vcombine.high %v891, %v891
          %v949 = vunpack.c.l.s4 1983009808
          %v950 = vunpack.c.0.s8 %v949
          %v951 = vlaneseq
          %v952 = vshrl.u32 %v951, 7
          %v953 = vsub.s32 %v950, %v952
          %v954 = vrot.slane %v891, %v953
          %v956 = vunpack.c.l.s4 1983009808
          %v957 = vunpack.c.0.s8 %v956
          %v958 = vlaneseq
          %v959 = vshrl.u32 %v958, 7
          %v960 = vsub.s32 %v957, %v959
          %v961 = vrot.slane %v947, %v960
          %v962 = vcombine.high %v954, %v954
          %v963 = vcombine.high %v961, %v961
          %v980 = vsel %vm619, %v903, 0.0
          %v981 = vsel %vm619, %v911, 0.0
          %v982 = vadd.f32 %v980, %v981
          %v983 = vsel %vm619, %v910, 0.0
          %v984 = vadd.f32 %v982, %v983
          %v985 = vsel %vm619, %v912, 0.0
          %v986 = vadd.f32 %v984, %v985
          %v987 = vsel %vm619, %v920, 0.0
          %v988 = vadd.f32 %v986, %v987
          %v989 = vsel %vm619, %v928, 0.0
          %v990 = vadd.f32 %v988, %v989
          %v991 = vsel %vm619, %v927, 0.0
          %v992 = vadd.f32 %v990, %v991
          %v993 = vsel %vm619, %v929, 0.0
          %v994 = vadd.f32 %v992, %v993
          %v995 = vsel %vm619, %v937, 0.0
          %v996 = vadd.f32 %v994, %v995
          %v997 = vsel %vm619, %v945, 0.0
          %v998 = vadd.f32 %v996, %v997
          %v999 = vsel %vm619, %v944, 0.0
          %v1000 = vadd.f32 %v998, %v999
          %v1001 = vsel %vm619, %v946, 0.0
          %v1002 = vadd.f32 %v1000, %v1001
          %v1003 = vsel %vm619, %v954, 0.0
          %v1004 = vadd.f32 %v1002, %v1003
          %v1005 = vsel %vm619, %v962, 0.0
          %v1006 = vadd.f32 %v1004, %v1005
          %v1007 = vsel %vm619, %v961, 0.0
          %v1008 = vadd.f32 %v1006, %v1007
          %v1009 = vsel %vm619, %v963, 0.0
          %v1010 = vadd.f32 %v1008, %v1009
          %1011 = vadd.xlane.f32.xlu0 %v1010
          %v1012 = vpop.xlane.xlu0 %1011
          %vm1013 = vcmp.eq.s32.totalorder %v290, 1
          %v1014 = vsel %vm1013, %v1012, 0.0
          %v1015 = vadd.f32 %v655, %v1014
          %v1016 = vld [vmem:[#allocation2] sm:$0x3]
          %v1017 = vadd.f32 %v1016, %v1015
          %vm1018 = vcmask 9216
          %1019 = vst.msk [vmem:[#allocation2] sm:$0x3] %vm1018, %v1017
          %s1020 = smul.u32 %s29, 2048
          %s1021 = sshra.s32 %s1020, 7
          %s1022 = sand.u32 %s1020, 127
          %s1023 = smul.addr %s1021, 2
          %s1024 = scalar_lea.vmem [#allocation4], %s1023
          %1025 = vst [vmem:[%s1024] sm:$0xff] %v281
          %1026 = vst [vmem:[%s1024 + $0x8] sm:$0xff] %v282
          %1027 = vst [vmem:[%s1024 + $0x10] sm:$0xff] %v283
          %1028 = vst [vmem:[%s1024 + $0x18] sm:$0xff] %v284
          // Predicated region
          $region53: #{tpu_custom_call.1} parent=47 // pred_check
            %p1029 = pneg %p275
          $region54: #{tpu_custom_call.1} parent=47 // pred_check_branch
            %1031 = sbr.rel (%p1029) target = $region56
          $region55: #{tpu_custom_call.1} parent=47 // pred_region
            %v1032 = vld [vmem:[#allocation2] sm:$0x3]
            %s1033 = sld [smem:[#allocation5]]
            %v1034 = vstv %s1033
            %v1035 = vsel %vm653, %v1034, 0.0
            %v1036 = vadd.f32 %v1032, %v1035
            %s1037 = sld [smem:[#allocation5 + $0x1]]
            %v1038 = vstv %s1037
            %v1039 = vsel %vm1013, %v1038, 0.0
            %v1040 = vadd.f32 %v1036, %v1039
            %v1041 = vsel %vm1018, %v1040, -inf
            %1042 = vmax.xlane.f32.xlu0 %v1041
            %v1043 = vpop.xlane.xlu0 %1042
            %v1044 = vsub.f32 %v1040, %v1043
            %v1045 = vmul.f32 %v1044, 1.442695
            %v1046 = vpow.pop %v1045
            %v1047 = vsel %vm1018, %v1046, 0.0
            %1048 = vadd.xlane.f32.xlu0 %v1047
            %v1049 = vpop.xlane.xlu0 %1048
            %v1050 = vrcp.pop %v1049
            %v1051 = vmul.f32 %v1046, %v1050
            %1052 = vst.msk [vmem:[#allocation3] sm:$0x3] %vm1018, %v1051
          $region56: #{tpu_custom_call.1} parent=47 // pred_fallthru
            _
        $region48: #{tpu_custom_call.1} parent=31 // pred_fallthru
          _
        %p1053 = scmp.eq.s32.totalorder %s28, 1
        // Predicated region
        $region57: #{tpu_custom_call.1} parent=31 // pred_check
          %p1054 = pneg %p1053
        $region58: #{tpu_custom_call.1} parent=31 // pred_check_branch
          %1056 = sbr.rel (%p1054) target = $region60
        $region59: #{tpu_custom_call.1} parent=31 // pred_region
          %v1057 = vld [vmem:[#allocation3] sm:$0x3]
          %s1058 = smul.u32 %s29, 1024
          %s1059 = sshra.s32 %s1058, 7
          %s1060 = sand.u32 %s1058, 127
          %s1061 = smul.addr %s1059, 2
          %s1062 = scalar_lea.vmem [#allocation4], %s1061
          %v1063 = vld [vmem:[%s1062] sm:$0xff]
          %v1064 = vld [vmem:[%s1062 + $0x8] sm:$0xff]
          %1066 = vset.pattern.permute.xlu0 0
          %1067 = vperm.xlu0 %1066, %v1057
          %v1068 = vpop.permute.xlu0 %1067
          %v1072 = vcombine.high %v1063, %v1063
          %v1074 = vunpack.c.l.s4 1983009808
          %v1075 = vunpack.c.0.s8 %v1074
          %v1076 = vlaneseq
          %v1077 = vshrl.u32 %v1076, 7
          %v1078 = vsub.s32 %v1075, %v1077
          %v1079 = vrot.slane %v1063, %v1078
          %v1081 = vunpack.c.l.s4 1983009808
          %v1082 = vunpack.c.0.s8 %v1081
          %v1083 = vlaneseq
          %v1084 = vshrl.u32 %v1083, 7
          %v1085 = vsub.s32 %v1082, %v1084
          %v1086 = vrot.slane %v1072, %v1085
          %v1087 = vcombine.high %v1079, %v1079
          %v1088 = vcombine.high %v1086, %v1086
          %v1089 = vcombine.high %v1064, %v1064
          %v1091 = vunpack.c.l.s4 1983009808
          %v1092 = vunpack.c.0.s8 %v1091
          %v1093 = vlaneseq
          %v1094 = vshrl.u32 %v1093, 7
          %v1095 = vsub.s32 %v1092, %v1094
          %v1096 = vrot.slane %v1064, %v1095
          %v1098 = vunpack.c.l.s4 1983009808
          %v1099 = vunpack.c.0.s8 %v1098
          %v1100 = vlaneseq
          %v1101 = vshrl.u32 %v1100, 7
          %v1102 = vsub.s32 %v1099, %v1101
          %v1103 = vrot.slane %v1089, %v1102
          %v1104 = vcombine.high %v1096, %v1096
          %v1105 = vcombine.high %v1103, %v1103
          %v1114 = vmul.f32 %v1068, %v1079
          %v1115 = vmul.f32 %v1068, %v1087
          %v1116 = vmul.f32 %v1068, %v1086
          %v1117 = vmul.f32 %v1068, %v1088
          %v1118 = vmul.f32 %v1068, %v1096
          %v1119 = vmul.f32 %v1068, %v1104
          %v1120 = vmul.f32 %v1068, %v1103
          %v1121 = vmul.f32 %v1068, %v1105
          %s1122 = sadd.s32 %s1058, 1024
          %s1123 = sshra.s32 %s1122, 7
          %s1124 = sand.u32 %s1122, 127
          %s1125 = smul.addr %s1123, 2
          %s1126 = scalar_lea.vmem [#allocation4], %s1125
          %v1127 = vld [vmem:[%s1126] sm:$0xff]
          %v1128 = vld [vmem:[%s1126 + $0x8] sm:$0xff]
          %1129 = vset.pattern.permute.xlu0 1
          %1130 = vperm.xlu0 %1129, %v1057
          %v1131 = vpop.permute.xlu0 %1130
          %v1135 = vcombine.high %v1127, %v1127
          %v1137 = vunpack.c.l.s4 1983009808
          %v1138 = vunpack.c.0.s8 %v1137
          %v1139 = vlaneseq
          %v1140 = vshrl.u32 %v1139, 7
          %v1141 = vsub.s32 %v1138, %v1140
          %v1142 = vrot.slane %v1127, %v1141
          %v1144 = vunpack.c.l.s4 1983009808
          %v1145 = vunpack.c.0.s8 %v1144
          %v1146 = vlaneseq
          %v1147 = vshrl.u32 %v1146, 7
          %v1148 = vsub.s32 %v1145, %v1147
          %v1149 = vrot.slane %v1135, %v1148
          %v1150 = vcombine.high %v1142, %v1142
          %v1151 = vcombine.high %v1149, %v1149
          %v1152 = vcombine.high %v1128, %v1128
          %v1154 = vunpack.c.l.s4 1983009808
          %v1155 = vunpack.c.0.s8 %v1154
          %v1156 = vlaneseq
          %v1157 = vshrl.u32 %v1156, 7
          %v1158 = vsub.s32 %v1155, %v1157
          %v1159 = vrot.slane %v1128, %v1158
          %v1161 = vunpack.c.l.s4 1983009808
          %v1162 = vunpack.c.0.s8 %v1161
          %v1163 = vlaneseq
          %v1164 = vshrl.u32 %v1163, 7
          %v1165 = vsub.s32 %v1162, %v1164
          %v1166 = vrot.slane %v1152, %v1165
          %v1167 = vcombine.high %v1159, %v1159
          %v1168 = vcombine.high %v1166, %v1166
          %v1177 = vmul.f32 %v1131, %v1142
          %v1178 = vmul.f32 %v1131, %v1150
          %v1179 = vmul.f32 %v1131, %v1149
          %v1180 = vmul.f32 %v1131, %v1151
          %v1181 = vmul.f32 %v1131, %v1159
          %v1182 = vmul.f32 %v1131, %v1167
          %v1183 = vmul.f32 %v1131, %v1166
          %v1184 = vmul.f32 %v1131, %v1168
          %v1185 = vadd.f32 %v1114, %v1177
          %v1186 = vadd.f32 %v1115, %v1178
          %v1187 = vadd.f32 %v1116, %v1179
          %v1188 = vadd.f32 %v1117, %v1180
          %v1189 = vadd.f32 %v1118, %v1181
          %v1190 = vadd.f32 %v1119, %v1182
          %v1191 = vadd.f32 %v1120, %v1183
          %v1192 = vadd.f32 %v1121, %v1184
          %v1201 = vcombine.low %v1185, %v1186
          %v1202 = vcombine.low %v1187, %v1188
          %v1204 = vunpack.c.l.s4 1983009808
          %v1205 = vunpack.c.0.s8 %v1204
          %v1206 = vlaneseq
          %v1207 = vshrl.u32 %v1206, 7
          %v1208 = vsub.s32 %v1205, %v1207
          %v1209 = vrot.slane %v1201, %v1208
          %v1211 = vunpack.c.l.s4 1983009808
          %v1212 = vunpack.c.0.s8 %v1211
          %v1213 = vlaneseq
          %v1214 = vshrl.u32 %v1213, 7
          %v1215 = vsub.s32 %v1212, %v1214
          %v1216 = vrot.slane %v1202, %v1215
          %v1217 = vcombine.low %v1209, %v1216
          %v1218 = vcombine.low %v1189, %v1190
          %v1219 = vcombine.low %v1191, %v1192
          %v1221 = vunpack.c.l.s4 1983009808
          %v1222 = vunpack.c.0.s8 %v1221
          %v1223 = vlaneseq
          %v1224 = vshrl.u32 %v1223, 7
          %v1225 = vsub.s32 %v1222, %v1224
          %v1226 = vrot.slane %v1218, %v1225
          %v1228 = vunpack.c.l.s4 1983009808
          %v1229 = vunpack.c.0.s8 %v1228
          %v1230 = vlaneseq
          %v1231 = vshrl.u32 %v1230, 7
          %v1232 = vsub.s32 %v1229, %v1231
          %v1233 = vrot.slane %v1219, %v1232
          %v1234 = vcombine.low %v1226, %v1233
          %1237 = vst [vmem:[%s262] sm:$0xff] %v1217
          %1238 = vst [vmem:[%s262 + $0x8] sm:$0xff] %v1234
        $region60: #{tpu_custom_call.1} parent=31 // pred_fallthru
          _
        %s1239 = sand.u32 %s127, 1
        %s1240 = scalar_lea.sflag [#allocation7], %s1239
        %s1241 = sand.u32 %s127, 1
        %s1242 = smul.addr %s1241, 16
        %s1243 = scalar_lea.vmem [#allocation12], %s1242
        // Predicated region
        $region61: #{tpu_custom_call.1} parent=31 // pred_check
          %p1244 = pneg %p137
        $region62: #{tpu_custom_call.1} parent=31 // pred_check_branch
          %1246 = sbr.rel (%p1244) target = $region64
        $region63: #{tpu_custom_call.1} parent=31 // pred_region
          %s1247 = smul.u32 %s29, %s28
          %s1248 = smul.u32 8, %s1247
          %s1250 = ssub.s32 256, 256
          %1251 = vsyncadd %s1240, %s1250
          %s1252 = smul.addr %s1248, 32
          %s1253 = scalar_lea.hbm %s3, %s1252
          %s1255 = sshll.u32 %s1243, 4
          %s1256 = int_to_ptr.vmem [resolvable:$true] %s1255
          %1258 = dma.vmem_to_hbm [thread:$0]  %s1256, 256, %s1253, %s1240
        $region64: #{tpu_custom_call.1} parent=31 // pred_fallthru
          _
      $region32: #{tpu_custom_call.1} parent=5 // pred_fallthru
        _
      %p1259 = scmp.le.s32.totalorder 2, %s19
      // Predicated region
      $region65: #{tpu_custom_call.1} parent=5 // pred_check
        %p1260 = pneg %p1259
      $region66: #{tpu_custom_call.1} parent=5 // pred_check_branch
        %1262 = sbr.rel (%p1260) target = $region68
      $region67: #{tpu_custom_call.1} parent=5 // pred_region
        %s1263 = ssub.s32 %s19, 2
        // Predicated region
        $region69: #{tpu_custom_call.1} parent=67 // pred_check
          %p1264 = pneg %p143
        $region70: #{tpu_custom_call.1} parent=67 // pred_check_branch
          %1266 = sbr.rel (%p1264) target = $region72
        $region71: #{tpu_custom_call.1} parent=67 // pred_region
          %s1267 = sand.u32 %s128, 1
          %s1268 = scalar_lea.sflag [#allocation7], %s1267
          %s1269 = sand.u32 %s128, 1
          %s1270 = smul.addr %s1269, 16
          %s1271 = scalar_lea.vmem [#allocation12], %s1270
          %1272 = dma.done %s1268, 256
        $region72: #{tpu_custom_call.1} parent=67 // pred_fallthru
          _
      $region68: #{tpu_custom_call.1} parent=5 // pred_fallthru
        _
    $region6: #{tpu_custom_call.1} parent=1 // loop_footer
      %s23 = sadd.s32 1, %s19
    $region7: #{tpu_custom_call.1} parent=1 // loop_footer_branch
      %18 = sbr.rel target = $region3
    $region8: #{tpu_custom_call.1} parent=1 // loop_exit
      _
    %1273 = vsyncpa [#allocation6], 1
    %s1274 = scalar_lea.sflag [#allocation6], 1
    %1275 = vsyncpa %s1274, 1
    %1276 = vsyncpa [#allocation11], 1
    %s1277 = scalar_lea.sflag [#allocation11], 1
    %1278 = vsyncpa %s1277, 1
    %1279 = vsyncpa [#allocation7], 1
    %s1280 = scalar_lea.sflag [#allocation7], 1
    %1281 = vsyncpa %s1280, 1
    %1282 = vsyncpa [#allocation8], 1
    %s1283 = scalar_lea.sflag [#allocation8], 1
    %1284 = vsyncpa %s1283, 1

</llo_original>
